<compile_context>
chip_gen: v7x
topology: tpu7x:2x2x1
jax: 0.10.0
libtpu: 0.0.40
codegen_flags: <defaults>
</compile_context>

<pallas_src>
import functools

import jax
import jax.numpy as jnp
from jax.experimental import pallas as pl
from jax.experimental.pallas import tpu as pltpu

_LANES = 128
_SUBLANES = 8
_MAX_TILE_ROWS = 8192          # 8192 x 128 x 4B = 4 MiB per f32 block
_MIN_PALLAS_ELEMS = 64 * 1024  # below this, fused XLA elementwise wins


def _round_up(n, m):
    return ((n + m - 1) // m) * m


def _residual_relu_kernel(x_ref, o_ref):
    # residual == x (blocks/shortcut are Identity): out = relu(x + x)
    v = x_ref[...]
    o_ref[...] = jnp.maximum(v + v, 0.0).astype(o_ref.dtype)


@functools.partial(
    jax.jit,
    static_argnames=("in_channels", "out_channels", "activation", "force_pallas"),
)
def residual_block_forward(x, in_channels, out_channels, activation="relu",
                           force_pallas=False):
    """Pallas implementation of ResidualBlock.forward for NCHW input x."""
    assert activation == "relu", "only 'relu' path implemented (module default)"
    # TODO(synk): leaky_relu / selu / none variants only change the elementwise
    # epilogue inside the kernel.
    del in_channels, out_channels  # no weights; shortcut stays Identity

    orig_shape = x.shape
    dtype = x.dtype

    total = 1
    for d in orig_shape:
        total *= d

    # Small inputs: kernel launch + layout plumbing dominate; let XLA fuse it.
    if total < _MIN_PALLAS_ELEMS and not force_pallas:
        return jnp.maximum(x + x, 0).astype(dtype)

    # Lane-dense layout: always 128 lanes; pad only to an (8,128)-aligned slab
    # (<= 1023 dead elements), not to a multiple of the tile.
    rows = pl.cdiv(total, _LANES)
    rows_padded = _round_up(rows, _SUBLANES)
    padded_total = rows_padded * _LANES

    # Tile rows: single block while small; otherwise aim for >= 4 grid steps so
    # v7x's two TensorCores can split the "parallel" axis, capped at 4 MiB per
    # block (near the HBM roofline knee; ~16 MiB VMEM with double-buffering).
    if rows_padded <= _MAX_TILE_ROWS // 2:
        tile_rows = rows_padded
    else:
        tile_rows = min(_MAX_TILE_ROWS,
                        _round_up(pl.cdiv(rows_padded, 4), _SUBLANES))

    x_flat = x.reshape(-1)
    if padded_total != total:
        x_flat = jnp.pad(x_flat, (0, padded_total - total))
    x2d = x_flat.reshape(rows_padded, _LANES)

    grid = (pl.cdiv(rows_padded, tile_rows),)  # ragged last block handled by Pallas

    itemsize = jnp.dtype(dtype).itemsize
    out2d = pl.pallas_call(
        _residual_relu_kernel,
        out_shape=jax.ShapeDtypeStruct((rows_padded, _LANES), dtype),
        grid_spec=pl.GridSpec(
            grid=grid,
            in_specs=[pl.BlockSpec((tile_rows, _LANES), lambda i: (i, 0))],
            out_specs=pl.BlockSpec((tile_rows, _LANES), lambda i: (i, 0)),
        ),
        compiler_params=pltpu.CompilerParams(
            dimension_semantics=("parallel",),   # lets v7x shard steps over both TCs
            vmem_limit_bytes=32 << 20,           # > v5e 16 MiB default, < v7x 64 MiB physical
            allow_input_fusion=[True],           # fuse pad/reshape producer into the call
        ),
        cost_estimate=pl.CostEstimate(
            flops=2 * padded_total,
            transcendentals=0,
            bytes_accessed=2 * padded_total * itemsize,
        ),
    )(x2d)

    out_flat = out2d.reshape(-1)
    if padded_total != total:
        out_flat = out_flat[:total]
    return out_flat.reshape(orig_shape)


def residual_block_reference(x):
    # Pure-JAX reference mirroring the PyTorch forward: relu(x + x)
    return jnp.maximum(x + x, 0)


if __name__ == "__main__":
    key = jax.random.PRNGKey(0)
    # NCHW: batch=2, channels=4, spatial=16x16 (ResidualBlock has no weights;
    # in_channels == out_channels == 4 so shortcut stays Identity).
    x = jax.random.normal(key, (2, 4, 16, 16), dtype=jnp.float32)

    ref = residual_block_reference(x)

    # force_pallas=True: the test shape is below the small-input bypass
    # threshold, but we want to exercise the Pallas kernel itself here.
    out = residual_block_forward(x, in_channels=4, out_channels=4,
                                 activation="relu", force_pallas=True)
    out = jax.block_until_ready(out)

    assert out.shape == x.shape and out.dtype == x.dtype
    assert jnp.allclose(out, ref, atol=1e-6, rtol=1e-6)

    # Also check the default (bypass) path used for small inputs in practice.
    out_small = jax.block_until_ready(
        residual_block_forward(x, in_channels=4, out_channels=4))
    assert jnp.allclose(out_small, ref, atol=1e-6, rtol=1e-6)

    print("KERNEL_OK")
</pallas_src>

<mosaic_0001>
module attributes {stable_mosaic.version = 11 : i64} {
  func.func @_residual_relu_kernel(%arg0: i32, %arg1: memref<16x128xf32, #tpu.memory_space<vmem>>, %arg2: memref<16x128xf32, #tpu.memory_space<vmem>>) attributes {dimension_semantics = [#tpu.dimension_semantics<parallel>], iteration_bounds = array<i64: 1>, scalar_prefetch = 0 : i64, scratch_operands = 0 : i64, tpu.core_type = #tpu.core_type<tc>, window_params = [{transform_indices = @transform_0, window_bounds = array<i64: 16, 128>}, {transform_indices = @transform_1, window_bounds = array<i64: 16, 128>}]} {
    %c0 = arith.constant 0 : index
    %c0_0 = arith.constant 0 : index
    %0 = vector.load %arg1[%c0, %c0_0] : memref<16x128xf32, #tpu.memory_space<vmem>>, vector<16x128xf32>
    %1 = arith.addf %0, %0 : vector<16x128xf32>
    %cst = arith.constant 0.000000e+00 : f32
    %2 = vector.broadcast %cst : f32 to vector<16x128xf32>
    %3 = arith.maximumf %1, %2 : vector<16x128xf32>
    %c0_1 = arith.constant 0 : index
    %c0_2 = arith.constant 0 : index
    %4 = vector.load %arg2[%c0_1, %c0_2] : memref<16x128xf32, #tpu.memory_space<vmem>>, vector<16x128xf32>
    tpu.vector_store %arg2[%c0_1, %c0_2], %3 {strides = array<i32>} : memref<16x128xf32, #tpu.memory_space<vmem>>, vector<16x128xf32>,
    return
  }
  func.func @transform_0(%arg0: i32) -> (i32, i32) {
    %c0_i32 = arith.constant 0 : i32
    %c0_i32_0 = arith.constant 0 : i32
    return %arg0, %c0_i32 : i32, i32
  }
  func.func @transform_1(%arg0: i32) -> (i32, i32) {
    %c0_i32 = arith.constant 0 : i32
    %c0_i32_0 = arith.constant 0 : i32
    return %arg0, %c0_i32 : i32, i32
  }
}

</mosaic_0001>

<llo_original>
// kernel: residual_block_forward.1
$region0: #{residual_block_forward.1}
  #allocation0 [shape = 'u32[]', space=smem, size = 0x4, offset = 0x4, fixed_abs, tag = 'smem constant byte address 0x4 - core index']
  #allocation1 [shape = 'u32[144,128]{1,0:T(1,128)}', space=vmem, size = 0x12000, scoped, tag = 'internal scratch']
  %s0 = inlined_call_operand.vmem [shape: f32[16,128], index: 0, kind: input, shape index: {}]
  %s1 = inlined_call_operand.vmem [shape: f32[16,128], index: 1, kind: output, shape index: {}]
  %s2 = sld [smem:[#allocation0]]
  $region14: #{residual_block_forward.1} parent=0
    _
  %s4 = ssub.s32 1, %s2
  %s5 = scalar_select 0, %s4, %s2
  // Predicated region
  $region2: #{residual_block_forward.1} parent=0 // pred_check
    _
  $region3: #{residual_block_forward.1} parent=0 // pred_check_branch
    %7 = sbr.rel (0) target = $region5
  $region4: #{residual_block_forward.1} parent=0 // pred_region
    _
  $region5: #{residual_block_forward.1} parent=0 // pred_fallthru
    _
  %v8 = vld [vmem:[%s0] sm:$0xff]
  %v9 = vld [vmem:[%s0 + $0x8] sm:$0xff]
  %v10 = vadd.f32 %v8, %v8
  %v11 = vadd.f32 %v9, %v9
  %v12 = vmax.f32 %v10, 0.0
  %v13 = vmax.f32 %v11, 0.0
  %14 = vst [vmem:[%s1] sm:$0xff] %v12
  %15 = vst [vmem:[%s1 + $0x8] sm:$0xff] %v13
  // Predicated region
  $region6: #{residual_block_forward.1} parent=0 // pred_check
    _
  $region7: #{residual_block_forward.1} parent=0 // pred_check_branch
    %17 = sbr.rel (0) target = $region9
  $region8: #{residual_block_forward.1} parent=0 // pred_region
    _
  $region9: #{residual_block_forward.1} parent=0 // pred_fallthru
    _
  // Predicated region
  $region10: #{residual_block_forward.1} parent=0 // pred_check
    _
  $region11: #{residual_block_forward.1} parent=0 // pred_check_branch
    %19 = sbr.rel (0) target = $region13
  $region12: #{residual_block_forward.1} parent=0 // pred_region
    _
  $region13: #{residual_block_forward.1} parent=0 // pred_fallthru
    _

</llo_original>
